<compile_context>
chip_gen: v7x
topology: tpu7x:2x2x1
jax: 0.10.0
libtpu: 0.0.40
codegen_flags: <defaults>
</compile_context>

<pallas_src>
import jax
import jax.numpy as jnp
from jax.experimental import pallas as pl
from jax.experimental.pallas import tpu as pltpu

HIDDEN = 128   # hidden width of the PGN MLP (fixed by the module)


def _round_up(x: int, m: int) -> int:
    return ((x + m - 1) // m) * m


def pgn_kernel(x_ref, w1_ref, b1_ref, w2_ref, b2_ref, out_ref):
    # x_ref : (TB, d_in)          w1_ref: (d_in, 128)    b1_ref: (1, 128) f32
    # w2_ref: (128, n_actions)    b2_ref: (1, n_actions) f32
    # out_ref: (TB, n_actions)    f32
    h = jnp.dot(x_ref[...], w1_ref[...], preferred_element_type=jnp.float32)
    h = jnp.maximum(h + b1_ref[...], 0.0)                     # bias + ReLU in f32 (VPU)
    logits = jnp.dot(h.astype(w2_ref.dtype), w2_ref[...],
                     preferred_element_type=jnp.float32) + b2_ref[...]
    out_ref[...] = logits.astype(out_ref.dtype)


def pgn_forward(x, w1, b1, w2, b2, *, tile_b=None, matmul_dtype=jnp.bfloat16):
    """PGN forward pass: logits = ReLU(x @ w1 + b1) @ w2 + b2.

    x : (B, input_size) float
    w1: (input_size, 128), b1: (128,)
    w2: (128, n_actions), b2: (n_actions,)
    tile_b      : batch rows per grid step; auto if None (>=2 tiles, <=4096 rows).
    matmul_dtype: dtype fed to the MXU (bf16 default — native on v5e/v6e/v7x
                  and halves the dominant HBM read stream; pass jnp.float32
                  for a bit-exact f32 forward).  Accumulation, bias add and
                  ReLU always run in float32.
    returns logits: (B, n_actions) float32
    """
    B, d_in = x.shape
    assert w1.shape == (d_in, HIDDEN)
    n_actions = w2.shape[1]
    assert w2.shape == (HIDDEN, n_actions)

    mm_bytes = jnp.dtype(matmul_dtype).itemsize

    # Batch tile: multiple of 8 (sublane rule), capped at 4096.  Auto-pick
    # targets >= 2 tiles so v7x's two TensorCores both get work; VMEM is a
    # non-issue at these sizes (a 4096 x 32 bf16 tile is 256 KiB), but keep a
    # safety cap for large d_in so double-buffered x tiles stay well under the
    # scoped-VMEM limit.
    if tile_b is None:
        if B <= 8:
            tile_b = _round_up(max(B, 1), 8)
        else:
            tile_b = min(4096, _round_up(-(-B // 2), 8))
    tile_b = max(8, min(4096, _round_up(tile_b, 8)))
    max_rows_vmem = max(8, (((8 << 20) // max(1, d_in * mm_bytes)) // 8) * 8)
    tile_b = min(tile_b, max_rows_vmem)
    num_tiles = pl.cdiv(B, tile_b)

    f32 = jnp.float32
    xk = x.astype(matmul_dtype)            # no-op if caller already supplies bf16
    w1k = w1.astype(matmul_dtype)
    w2k = w2.astype(matmul_dtype)
    b1k = b1.reshape(1, HIDDEN).astype(f32)
    b2k = b2.reshape(1, n_actions).astype(f32)

    grid_spec = pltpu.PrefetchScalarGridSpec(
        num_scalar_prefetch=0,
        grid=(num_tiles,),
        in_specs=[
            pl.BlockSpec((tile_b, d_in), lambda i: (i, 0)),        # x   : streamed per tile
            pl.BlockSpec((d_in, HIDDEN), lambda i: (0, 0)),        # w1  : VMEM-resident
            pl.BlockSpec((1, HIDDEN), lambda i: (0, 0)),           # b1  : VMEM-resident
            pl.BlockSpec((HIDDEN, n_actions), lambda i: (0, 0)),   # w2  : VMEM-resident
            pl.BlockSpec((1, n_actions), lambda i: (0, 0)),        # b2  : VMEM-resident
        ],
        out_specs=pl.BlockSpec((tile_b, n_actions), lambda i: (i, 0)),
    )

    cost = pl.CostEstimate(
        flops=2 * B * d_in * HIDDEN + 2 * B * HIDDEN * n_actions,
        transcendentals=0,
        bytes_accessed=(B * d_in * mm_bytes                     # x read
                        + B * n_actions * 4                     # out write (f32)
                        + d_in * HIDDEN * mm_bytes              # w1
                        + HIDDEN * n_actions * mm_bytes         # w2
                        + (HIDDEN + n_actions) * 4),            # biases
    )

    out = pl.pallas_call(
        pgn_kernel,
        out_shape=jax.ShapeDtypeStruct((B, n_actions), jnp.float32),
        grid_spec=grid_spec,
        compiler_params=pltpu.CompilerParams(
            dimension_semantics=("parallel",),      # shard batch tiles over TCs (v7x)
            vmem_limit_bytes=32 * 1024 * 1024,
        ),
        cost_estimate=cost,
    )(xk, w1k, b1k, w2k, b2k)

    return out


def init_params(key, input_size, n_actions):
    """PyTorch Linear-style init: uniform(-1/sqrt(fan_in), 1/sqrt(fan_in))."""
    k1, k2, k3, k4 = jax.random.split(key, 4)
    bound1 = 1.0 / jnp.sqrt(input_size)
    bound2 = 1.0 / jnp.sqrt(HIDDEN)
    w1 = jax.random.uniform(k1, (input_size, HIDDEN), jnp.float32, -bound1, bound1)
    b1 = jax.random.uniform(k2, (HIDDEN,), jnp.float32, -bound1, bound1)
    w2 = jax.random.uniform(k3, (HIDDEN, n_actions), jnp.float32, -bound2, bound2)
    b2 = jax.random.uniform(k4, (n_actions,), jnp.float32, -bound2, bound2)
    return w1, b1, w2, b2


def _reference(x, w1, b1, w2, b2):
    return jnp.maximum(x @ w1 + b1, 0.0) @ w2 + b2


if __name__ == "__main__":
    input_size = 32    # small CartPole-ish observation size
    n_actions = 4
    batch = 8

    key = jax.random.PRNGKey(0)
    kx, kp, kx2 = jax.random.split(key, 3)
    x = jax.random.normal(kx, (batch, input_size), jnp.float32)
    w1, b1, w2, b2 = init_params(kp, input_size, n_actions)
    ref = _reference(x, w1, b1, w2, b2)

    # 1) Small inference-style batch (single grid tile), f32 MXU path —
    #    matches the PyTorch module numerically.
    logits = jax.block_until_ready(
        pgn_forward(x, w1, b1, w2, b2, matmul_dtype=jnp.float32))
    assert logits.shape == (batch, n_actions)
    assert jnp.allclose(logits, ref, atol=1e-5, rtol=1e-5)

    # 2) Default bf16 matmul-input path on a batch that does not divide the
    #    auto-picked tile: exercises the multi-tile grid and the ragged last
    #    tile (padded reads / masked boundary writes), no wrapper pad/slice.
    big_b = 300
    xb = jax.random.normal(kx2, (big_b, input_size), jnp.float32)
    ref_big = _reference(xb, w1, b1, w2, b2)
    logits_big = jax.block_until_ready(pgn_forward(xb, w1, b1, w2, b2))
    assert logits_big.shape == (big_b, n_actions)
    assert jnp.allclose(logits_big, ref_big, atol=1e-1, rtol=1e-1)

    # 3) Explicit small tile -> 3 grid steps (last one ragged), f32 path,
    #    tight tolerance on the ragged-boundary handling.
    logits_t = jax.block_until_ready(
        pgn_forward(xb, w1, b1, w2, b2, tile_b=128, matmul_dtype=jnp.float32))
    assert jnp.allclose(logits_t, ref_big, atol=1e-4, rtol=1e-4)

    # TODO(synk): at B~8 per env step an XLA-fused jnp forward beats any kernel
    # launch; the Pallas path is intended for large batched rollouts.
    print("KERNEL_OK")
</pallas_src>

<mosaic_0001>
module attributes {stable_mosaic.version = 11 : i64} {
  func.func @pgn_kernel(%arg0: i32, %arg1: memref<8x32xf32, #tpu.memory_space<vmem>>, %arg2: memref<32x128xf32, #tpu.memory_space<vmem>>, %arg3: memref<1x128xf32, #tpu.memory_space<vmem>>, %arg4: memref<128x4xf32, #tpu.memory_space<vmem>>, %arg5: memref<1x4xf32, #tpu.memory_space<vmem>>, %arg6: memref<8x4xf32, #tpu.memory_space<vmem>>) attributes {dimension_semantics = [#tpu.dimension_semantics<parallel>], iteration_bounds = array<i64: 1>, scalar_prefetch = 0 : i64, scratch_operands = 0 : i64, tpu.core_type = #tpu.core_type<tc>, window_params = [{transform_indices = @transform_0, window_bounds = array<i64: 8, 32>}, {pipeline_mode = #tpu.pipeline_mode<synchronous>, transform_indices = @transform_1, window_bounds = array<i64: 32, 128>}, {pipeline_mode = #tpu.pipeline_mode<synchronous>, transform_indices = @transform_2, window_bounds = array<i64: 1, 128>}, {pipeline_mode = #tpu.pipeline_mode<synchronous>, transform_indices = @transform_3, window_bounds = array<i64: 128, 4>}, {pipeline_mode = #tpu.pipeline_mode<synchronous>, transform_indices = @transform_4, window_bounds = array<i64: 1, 4>}, {transform_indices = @transform_5, window_bounds = array<i64: 8, 4>}]} {
    %c0 = arith.constant 0 : index
    %c0_0 = arith.constant 0 : index
    %0 = vector.load %arg1[%c0, %c0_0] : memref<8x32xf32, #tpu.memory_space<vmem>>, vector<8x32xf32>
    %c0_1 = arith.constant 0 : index
    %c0_2 = arith.constant 0 : index
    %1 = vector.load %arg2[%c0_1, %c0_2] : memref<32x128xf32, #tpu.memory_space<vmem>>, vector<32x128xf32>
    %cst = arith.constant dense<0.000000e+00> : vector<8x128xf32>
    %2 = tpu.matmul %0, %1, %cst {dimension_numbers = #tpu.dot_dimension_numbers<[1], [0], [0], [1], [0, 0, 1, 1], [], []>} : vector<8x32xf32>, vector<32x128xf32>, vector<8x128xf32> -> vector<8x128xf32>
    %c0_3 = arith.constant 0 : index
    %c0_4 = arith.constant 0 : index
    %3 = vector.load %arg3[%c0_3, %c0_4] : memref<1x128xf32, #tpu.memory_space<vmem>>, vector<1x128xf32>
    %4 = vector.broadcast %3 : vector<1x128xf32> to vector<8x128xf32>
    %5 = arith.addf %2, %4 : vector<8x128xf32>
    %cst_5 = arith.constant 0.000000e+00 : f32
    %6 = vector.broadcast %cst_5 : f32 to vector<8x128xf32>
    %7 = arith.maximumf %5, %6 : vector<8x128xf32>
    %c0_6 = arith.constant 0 : index
    %c0_7 = arith.constant 0 : index
    %8 = vector.load %arg4[%c0_6, %c0_7] : memref<128x4xf32, #tpu.memory_space<vmem>>, vector<128x4xf32>
    %cst_8 = arith.constant dense<0.000000e+00> : vector<8x4xf32>
    %9 = tpu.matmul %7, %8, %cst_8 {dimension_numbers = #tpu.dot_dimension_numbers<[1], [0], [0], [1], [0, 0, 1, 1], [], []>} : vector<8x128xf32>, vector<128x4xf32>, vector<8x4xf32> -> vector<8x4xf32>
    %c0_9 = arith.constant 0 : index
    %c0_10 = arith.constant 0 : index
    %10 = vector.load %arg5[%c0_9, %c0_10] : memref<1x4xf32, #tpu.memory_space<vmem>>, vector<1x4xf32>
    %11 = vector.broadcast %10 : vector<1x4xf32> to vector<8x4xf32>
    %12 = arith.addf %9, %11 : vector<8x4xf32>
    %c0_11 = arith.constant 0 : index
    %c0_12 = arith.constant 0 : index
    %13 = vector.load %arg6[%c0_11, %c0_12] : memref<8x4xf32, #tpu.memory_space<vmem>>, vector<8x4xf32>
    tpu.vector_store %arg6[%c0_11, %c0_12], %12 {strides = array<i32>} : memref<8x4xf32, #tpu.memory_space<vmem>>, vector<8x4xf32>,
    return
  }
  func.func @transform_0(%arg0: i32) -> (i32, i32) {
    %c0_i32 = arith.constant 0 : i32
    %c0_i32_0 = arith.constant 0 : i32
    return %arg0, %c0_i32 : i32, i32
  }
  func.func @transform_1(%arg0: i32) -> (i32, i32) {
    %c0_i32 = arith.constant 0 : i32
    %c0_i32_0 = arith.constant 0 : i32
    %c0_i32_1 = arith.constant 0 : i32
    return %c0_i32, %c0_i32_0 : i32, i32
  }
  func.func @transform_2(%arg0: i32) -> (i32, i32) {
    %c0_i32 = arith.constant 0 : i32
    %c0_i32_0 = arith.constant 0 : i32
    %c0_i32_1 = arith.constant 0 : i32
    return %c0_i32, %c0_i32_0 : i32, i32
  }
  func.func @transform_3(%arg0: i32) -> (i32, i32) {
    %c0_i32 = arith.constant 0 : i32
    %c0_i32_0 = arith.constant 0 : i32
    %c0_i32_1 = arith.constant 0 : i32
    return %c0_i32, %c0_i32_0 : i32, i32
  }
  func.func @transform_4(%arg0: i32) -> (i32, i32) {
    %c0_i32 = arith.constant 0 : i32
    %c0_i32_0 = arith.constant 0 : i32
    %c0_i32_1 = arith.constant 0 : i32
    return %c0_i32, %c0_i32_0 : i32, i32
  }
  func.func @transform_5(%arg0: i32) -> (i32, i32) {
    %c0_i32 = arith.constant 0 : i32
    %c0_i32_0 = arith.constant 0 : i32
    return %arg0, %c0_i32 : i32, i32
  }
}

</mosaic_0001>

<llo_original>
// kernel: tpu_custom_call.1
$region0: #{tpu_custom_call.1}
  #allocation0 [shape = 'u32[]', space=smem, size = 0x4, offset = 0x4, fixed_abs, tag = 'smem constant byte address 0x4 - core index']
  #allocation1 [shape = 'u32[144,128]{1,0:T(1,128)}', space=vmem, size = 0x12000, scoped, tag = 'internal scratch']
  %s0 = inlined_call_operand.vmem [shape: f32[8,32], index: 0, kind: input, shape index: {}]
  %s1 = inlined_call_operand.vmem [shape: f32[32,128], index: 1, kind: input, shape index: {}]
  %s2 = inlined_call_operand.vmem [shape: f32[1,128], index: 2, kind: input, shape index: {}]
  %s3 = inlined_call_operand.vmem [shape: f32[128,4], index: 3, kind: input, shape index: {}]
  %s4 = inlined_call_operand.vmem [shape: f32[1,4], index: 4, kind: input, shape index: {}]
  %s5 = inlined_call_operand.vmem [shape: f32[8,4], index: 5, kind: output, shape index: {}]
  %s6 = sld [smem:[#allocation0]]
  $region30: #{tpu_custom_call.1} parent=0
    _
  %s8 = ssub.s32 1, %s6
  %s9 = scalar_select 0, %s8, %s6
  // Predicated region
  $region2: #{tpu_custom_call.1} parent=0 // pred_check
    _
  $region3: #{tpu_custom_call.1} parent=0 // pred_check_branch
    %11 = sbr.rel (0) target = $region5
  $region4: #{tpu_custom_call.1} parent=0 // pred_region
    _
  $region5: #{tpu_custom_call.1} parent=0 // pred_fallthru
    _
  // Predicated region
  $region6: #{tpu_custom_call.1} parent=0 // pred_check
    _
  $region7: #{tpu_custom_call.1} parent=0 // pred_check_branch
    %13 = sbr.rel (0) target = $region9
  $region8: #{tpu_custom_call.1} parent=0 // pred_region
    _
  $region9: #{tpu_custom_call.1} parent=0 // pred_fallthru
    _
  // Predicated region
  $region10: #{tpu_custom_call.1} parent=0 // pred_check
    _
  $region11: #{tpu_custom_call.1} parent=0 // pred_check_branch
    %15 = sbr.rel (0) target = $region13
  $region12: #{tpu_custom_call.1} parent=0 // pred_region
    _
  $region13: #{tpu_custom_call.1} parent=0 // pred_fallthru
    _
  // Predicated region
  $region14: #{tpu_custom_call.1} parent=0 // pred_check
    _
  $region15: #{tpu_custom_call.1} parent=0 // pred_check_branch
    %17 = sbr.rel (0) target = $region17
  $region16: #{tpu_custom_call.1} parent=0 // pred_region
    _
  $region17: #{tpu_custom_call.1} parent=0 // pred_fallthru
    _
  // Predicated region
  $region18: #{tpu_custom_call.1} parent=0 // pred_check
    _
  $region19: #{tpu_custom_call.1} parent=0 // pred_check_branch
    %19 = sbr.rel (0) target = $region21
  $region20: #{tpu_custom_call.1} parent=0 // pred_region
    _
  $region21: #{tpu_custom_call.1} parent=0 // pred_fallthru
    _
  %v20 = vld [vmem:[%s0] sm:$0xff]
  %v21 = vld [vmem:[%s1] sm:$0xff]
  %v22 = vld [vmem:[%s1 + $0x8] sm:$0xff]
  %v23 = vld [vmem:[%s1 + $0x10] sm:$0xff]
  %v24 = vld [vmem:[%s1 + $0x18] sm:$0xff]
  %v25 = vld [vmem:[%s2] sm:$0x1]
  %v27 = vlaneseq
  %v28 = vshrl.u32 %v27, 7
  %v29 = vsub.s32 0, %v28
  %v30 = vrot.slane %v25, %v29
  %vm32 = vcmask 261120
  %v34 = vsel %vm32, %v20, 0
  %36 = vmatprep.subr.mxu0 0.0
  %37 = vmatpush1.msra.mxu0 %v21
  %38 = vmatprep.subr.mxu0 0.0
  %39 = vmatpush1.msra.mxu0 %v22
  %40 = vmatprep.subr.mxu0 0.0
  %41 = vmatpush1.msra.mxu0 %v23
  %42 = vmatprep.subr.mxu0 0.0
  %43 = vmatpush1.msra.mxu0 %v24
  %44 = vmatprep.subr.mxu0 0.0
  %45 = vmatpush1.msra.mxu0 0.0
  %46 = vmatprep.subr.mxu0 0.0
  %47 = vmatpush1.msra.mxu0 0.0
  %48 = vmatprep.subr.mxu0 0.0
  %49 = vmatpush1.msra.mxu0 0.0
  %50 = vmatprep.subr.mxu0 0.0
  %51 = vmatpush1.msra.mxu0 0.0
  %52 = vmatprep.subr.mxu0 0.0
  %53 = vmatpush1.msra.mxu0 0.0
  %54 = vmatprep.subr.mxu0 0.0
  %55 = vmatpush1.msra.mxu0 0.0
  %56 = vmatprep.subr.mxu0 0.0
  %57 = vmatpush1.msra.mxu0 0.0
  %58 = vmatprep.subr.mxu0 0.0
  %59 = vmatpush1.msra.mxu0 0.0
  %60 = vmatprep.subr.mxu0 0.0
  %61 = vmatpush1.msra.mxu0 0.0
  %62 = vmatprep.subr.mxu0 0.0
  %63 = vmatpush1.msra.mxu0 0.0
  %64 = vmatprep.subr.mxu0 0.0
  %65 = vmatpush1.msra.mxu0 0.0
  %66 = vmatprep.subr.mxu0 0.0
  %67 = vmatpush1.msra.mxu0 0.0
  %68 = vmatprep.subr.mxu0 0.0
  %69 = vmatpush1.msra.mxu0 0.0
  %70 = vmatprep.subr.mxu0 0.0
  %71 = vmatpush1.msra.mxu0 0.0
  %72 = vmatprep.subr.mxu0 0.0
  %73 = vmatpush1.msra.mxu0 0.0
  %74 = vmatprep.subr.mxu0 0.0
  %75 = vmatpush1.msra.mxu0 0.0
  %76 = vmatprep.subr.mxu0 0.0
  %77 = vmatpush1.msra.mxu0 0.0
  %78 = vmatprep.subr.mxu0 0.0
  %79 = vmatpush1.msra.mxu0 0.0
  %80 = vmatprep.subr.mxu0 0.0
  %81 = vmatpush1.msra.mxu0 0.0
  %82 = vmatprep.subr.mxu0 0.0
  %83 = vmatpush1.msra.mxu0 0.0
  %84 = vmatprep.subr.mxu0 0.0
  %85 = vmatpush1.msra.mxu0 0.0
  %86 = vmatprep.subr.mxu0 0.0
  %87 = vmatpush1.msra.mxu0 0.0
  %88 = vmatprep.subr.mxu0 0.0
  %89 = vmatpush1.msra.mxu0 0.0
  %90 = vmatprep.subr.mxu0 0.0
  %91 = vmatpush1.msra.mxu0 0.0
  %92 = vmatprep.subr.mxu0 0.0
  %93 = vmatpush1.msra.mxu0 0.0
  %94 = vmatprep.subr.mxu0 0.0
  %95 = vmatpush1.msra.mxu0 0.0
  %96 = vmatprep.subr.mxu0 0.0
  %97 = vmatpush1.msra.mxu0 0.0
  %98 = vmatprep.subr.mxu0 0.0
  %99 = vmatpush1.msra.mxu0 0.0
  %100 = vmatprep.mubr.f32.mxu0 0.0
  %101 = vmatmul.mubr.f32.gmra.mrb[0].mxu0 %v34
  %v102 = vpop.f32.mrb[0].mxu0
  %v103 = vadd.f32 %v30, %v102
  %v104 = vpop.f32.mrb[0].mxu0
  %105 = vdwg.mxu0
  %v106 = vmax.f32 %v103, 0.0
  %v107 = vld [vmem:[%s3] sm:$0xff]
  %v108 = vld [vmem:[%s3 + $0x8] sm:$0xff]
  %v109 = vld [vmem:[%s3 + $0x10] sm:$0xff]
  %v110 = vld [vmem:[%s3 + $0x18] sm:$0xff]
  %v111 = vld [vmem:[%s3 + $0x20] sm:$0xff]
  %v112 = vld [vmem:[%s3 + $0x28] sm:$0xff]
  %v113 = vld [vmem:[%s3 + $0x30] sm:$0xff]
  %v114 = vld [vmem:[%s3 + $0x38] sm:$0xff]
  %v115 = vld [vmem:[%s3 + $0x40] sm:$0xff]
  %v116 = vld [vmem:[%s3 + $0x48] sm:$0xff]
  %v117 = vld [vmem:[%s3 + $0x50] sm:$0xff]
  %v118 = vld [vmem:[%s3 + $0x58] sm:$0xff]
  %v119 = vld [vmem:[%s3 + $0x60] sm:$0xff]
  %v120 = vld [vmem:[%s3 + $0x68] sm:$0xff]
  %v121 = vld [vmem:[%s3 + $0x70] sm:$0xff]
  %v122 = vld [vmem:[%s3 + $0x78] sm:$0xff]
  %v123 = vld [vmem:[%s4] sm:$0x1]
  %v125 = vlaneseq
  %v126 = vshrl.u32 %v125, 7
  %v127 = vsub.s32 0, %v126
  %v128 = vrot.slane %v123, %v127
  %130 = vmatprep.subr.mxu0 0.0
  %131 = vmatpush1.msra.mxu0 %v107
  %132 = vmatprep.subr.mxu0 0.0
  %133 = vmatpush1.msra.mxu0 %v108
  %134 = vmatprep.subr.mxu0 0.0
  %135 = vmatpush1.msra.mxu0 %v109
  %136 = vmatprep.subr.mxu0 0.0
  %137 = vmatpush1.msra.mxu0 %v110
  %138 = vmatprep.subr.mxu0 0.0
  %139 = vmatpush1.msra.mxu0 %v111
  %140 = vmatprep.subr.mxu0 0.0
  %141 = vmatpush1.msra.mxu0 %v112
  %142 = vmatprep.subr.mxu0 0.0
  %143 = vmatpush1.msra.mxu0 %v113
  %144 = vmatprep.subr.mxu0 0.0
  %145 = vmatpush1.msra.mxu0 %v114
  %146 = vmatprep.subr.mxu0 0.0
  %147 = vmatpush1.msra.mxu0 %v115
  %148 = vmatprep.subr.mxu0 0.0
  %149 = vmatpush1.msra.mxu0 %v116
  %150 = vmatprep.subr.mxu0 0.0
  %151 = vmatpush1.msra.mxu0 %v117
  %152 = vmatprep.subr.mxu0 0.0
  %153 = vmatpush1.msra.mxu0 %v118
  %154 = vmatprep.subr.mxu0 0.0
  %155 = vmatpush1.msra.mxu0 %v119
  %156 = vmatprep.subr.mxu0 0.0
  %157 = vmatpush1.msra.mxu0 %v120
  %158 = vmatprep.subr.mxu0 0.0
  %159 = vmatpush1.msra.mxu0 %v121
  %160 = vmatprep.subr.mxu0 0.0
  %161 = vmatpush1.msra.mxu0 %v122
  %162 = vmatprep.subr.mxu0 0.0
  %163 = vmatpush1.msra.mxu0 0.0
  %164 = vmatprep.subr.mxu0 0.0
  %165 = vmatpush1.msra.mxu0 0.0
  %166 = vmatprep.subr.mxu0 0.0
  %167 = vmatpush1.msra.mxu0 0.0
  %168 = vmatprep.subr.mxu0 0.0
  %169 = vmatpush1.msra.mxu0 0.0
  %170 = vmatprep.subr.mxu0 0.0
  %171 = vmatpush1.msra.mxu0 0.0
  %172 = vmatprep.subr.mxu0 0.0
  %173 = vmatpush1.msra.mxu0 0.0
  %174 = vmatprep.subr.mxu0 0.0
  %175 = vmatpush1.msra.mxu0 0.0
  %176 = vmatprep.subr.mxu0 0.0
  %177 = vmatpush1.msra.mxu0 0.0
  %178 = vmatprep.subr.mxu0 0.0
  %179 = vmatpush1.msra.mxu0 0.0
  %180 = vmatprep.subr.mxu0 0.0
  %181 = vmatpush1.msra.mxu0 0.0
  %182 = vmatprep.subr.mxu0 0.0
  %183 = vmatpush1.msra.mxu0 0.0
  %184 = vmatprep.subr.mxu0 0.0
  %185 = vmatpush1.msra.mxu0 0.0
  %186 = vmatprep.subr.mxu0 0.0
  %187 = vmatpush1.msra.mxu0 0.0
  %188 = vmatprep.subr.mxu0 0.0
  %189 = vmatpush1.msra.mxu0 0.0
  %190 = vmatprep.subr.mxu0 0.0
  %191 = vmatpush1.msra.mxu0 0.0
  %192 = vmatprep.subr.mxu0 0.0
  %193 = vmatpush1.msra.mxu0 0.0
  %194 = vmatprep.mubr.f32.mxu0 0.0
  %195 = vmatmul.mubr.f32.gmra.mrb[0].mxu0 %v106
  %v196 = vpop.f32.mrb[0].mxu0
  %v197 = vadd.f32 %v128, %v196
  %v198 = vpop.f32.mrb[0].mxu0
  %199 = vdwg.mxu0
  %vm200 = vcmask 31744
  %201 = vst.msk [vmem:[%s5] sm:$0xff] %vm200, %v197
  // Predicated region
  $region22: #{tpu_custom_call.1} parent=0 // pred_check
    _
  $region23: #{tpu_custom_call.1} parent=0 // pred_check_branch
    %203 = sbr.rel (0) target = $region25
  $region24: #{tpu_custom_call.1} parent=0 // pred_region
    _
  $region25: #{tpu_custom_call.1} parent=0 // pred_fallthru
    _
  // Predicated region
  $region26: #{tpu_custom_call.1} parent=0 // pred_check
    _
  $region27: #{tpu_custom_call.1} parent=0 // pred_check_branch
    %205 = sbr.rel (0) target = $region29
  $region28: #{tpu_custom_call.1} parent=0 // pred_region
    _
  $region29: #{tpu_custom_call.1} parent=0 // pred_fallthru
    _

</llo_original>
